<compile_context>
chip_gen: v7x
topology: tpu7x:2x2x1
jax: 0.10.0
libtpu: 0.0.40
codegen_flags: <defaults>
</compile_context>

<pallas_src>
import functools

import jax
import jax.numpy as jnp
from jax import lax
from jax.experimental import pallas as pl
from jax.experimental.pallas import tpu as pltpu

LN_EPS = 1e-5  # PyTorch nn.LayerNorm default


def _round_up(x, m):
    return (x + m - 1) // m * m


def _pick_row_tile(m_rows):
    """Token-row tile: multiple of 8, aims for >=2 grid points (megacore)."""
    if m_rows <= 8:
        return 8
    half = _round_up(-(-m_rows // 2), 8)
    return min(256, half)


# ----------------------------- kernels -------------------------------------
def _patch_embed_kernel(p_ref, w_ref, b_ref, o_ref):
    # Conv-as-matmul: (TM, K) @ (K, E) + bias. Single MXU push per tile.
    x = jnp.dot(p_ref[...], w_ref[...], preferred_element_type=jnp.float32)
    o_ref[...] = (x + b_ref[...]).astype(o_ref.dtype)


def _patch_embed_ln_kernel(p_ref, w_ref, b_ref, g_ref, beta_ref, o_ref):
    # Conv-as-matmul + fused per-token LayerNorm over embed_dim.
    x = jnp.dot(p_ref[...], w_ref[...], preferred_element_type=jnp.float32)
    x = x + b_ref[...]                                        # (TM, E) f32
    mean = jnp.mean(x, axis=-1, keepdims=True)
    # E[x^2]-E[x]^2 can go slightly negative by f32 cancellation -> clamp.
    var = jnp.maximum(jnp.mean(x * x, axis=-1, keepdims=True) - mean * mean, 0.0)
    y = (x - mean) * lax.rsqrt(var + LN_EPS) * g_ref[...] + beta_ref[...]
    o_ref[...] = y.astype(o_ref.dtype)


# ----------------------------- wrapper --------------------------------------
def patch_embed_forward(x_nchw, params, *, patch_size=4, use_norm=True,
                        compute_dtype=jnp.float32):
    """PatchEmbed.forward: NCHW in -> (N, embed_dim, Wh, Ww) out (like PyTorch)."""
    p = patch_size
    N, C, H, W = x_nchw.shape
    pad_h = (-H) % p
    pad_w = (-W) % p
    x = x_nchw
    if pad_h or pad_w:  # matches F.pad right/bottom zero padding
        x = jnp.pad(x, ((0, 0), (0, 0), (0, pad_h), (0, pad_w)))
    Hp, Wp = H + pad_h, W + pad_w
    Wh, Ww = Hp // p, Wp // p

    # im2col (wrapper-side layout plumbing): row = token, col = (dy, dx, c).
    patches = x.reshape(N, C, Wh, p, Ww, p)
    patches = patches.transpose(0, 2, 4, 3, 5, 1).reshape(N * Wh * Ww, p * p * C)

    w = params["w"]                      # HWIO: (p, p, C, E)
    E = w.shape[-1]
    K = p * p * C
    w_mat = w.reshape(K, E)

    M = N * Wh * Ww
    TM = _pick_row_tile(M)
    M_pad = _round_up(M, TM)
    if M_pad != M:
        # zero rows are harmless (LN on zeros stays finite via eps) and sliced off.
        patches = jnp.pad(patches, ((0, M_pad - M), (0, 0)))

    # MXU operands (optionally bf16); epilogue params stay f32.
    patches = patches.astype(compute_dtype)
    w_mat = w_mat.astype(compute_dtype)
    b2 = params["b"].reshape(1, E).astype(jnp.float32)

    in_specs = [
        pl.BlockSpec((TM, K), lambda i: (i, 0)),
        pl.BlockSpec((K, E), lambda i: (0, 0)),
        pl.BlockSpec((1, E), lambda i: (0, 0)),
    ]
    args = [patches, w_mat, b2]
    if use_norm:
        kernel = _patch_embed_ln_kernel
        in_specs += [pl.BlockSpec((1, E), lambda i: (0, 0)),
                     pl.BlockSpec((1, E), lambda i: (0, 0))]
        args += [params["gamma"].reshape(1, E).astype(jnp.float32),
                 params["beta"].reshape(1, E).astype(jnp.float32)]
    else:
        kernel = _patch_embed_kernel

    cost = pl.CostEstimate(
        flops=int(2 * M_pad * K * E),
        transcendentals=int(M_pad if use_norm else 0),
        bytes_accessed=int(patches.size * patches.dtype.itemsize
                           + w_mat.size * w_mat.dtype.itemsize
                           + M_pad * E * 4),
    )

    out = pl.pallas_call(
        kernel,
        out_shape=jax.ShapeDtypeStruct((M_pad, E), jnp.float32),
        grid_spec=pltpu.PrefetchScalarGridSpec(
            num_scalar_prefetch=0,
            grid=(M_pad // TM,),
            in_specs=in_specs,
            out_specs=pl.BlockSpec((TM, E), lambda i: (i, 0)),
        ),
        compiler_params=pltpu.CompilerParams(
            dimension_semantics=("parallel",)),
        cost_estimate=cost,
    )(*args)

    # Tokens -> (N, embed_dim, Wh, Ww), matching the PyTorch module output.
    return out[:M].reshape(N, Wh, Ww, E).transpose(0, 3, 1, 2)


# ---------------- pure-JAX reference (validation only) ----------------------
def _ref_patch_embed(x_nchw, params, *, patch_size=4, use_norm=True):
    p = patch_size
    N, C, H, W = x_nchw.shape
    x = jnp.pad(x_nchw, ((0, 0), (0, 0), (0, (-H) % p), (0, (-W) % p)))
    x = jnp.transpose(x, (0, 2, 3, 1))  # NHWC
    y = lax.conv_general_dilated(
        x, params["w"], window_strides=(p, p), padding="VALID",
        dimension_numbers=("NHWC", "HWIO", "NHWC"),
        precision=lax.Precision.HIGHEST)
    y = y + params["b"].reshape(1, 1, 1, -1)
    if use_norm:
        mean = jnp.mean(y, axis=-1, keepdims=True)
        var = jnp.mean((y - mean) ** 2, axis=-1, keepdims=True)
        y = (y - mean) * lax.rsqrt(var + LN_EPS)
        y = y * params["gamma"].reshape(1, 1, 1, -1) + params["beta"].reshape(1, 1, 1, -1)
    return jnp.transpose(y, (0, 3, 1, 2))


if __name__ == "__main__":
    # PatchEmbed defaults: patch_size=4, in_chans=3, embed_dim=96.
    # H/W are not multiples of 4 so the pad path is exercised.
    N, C, H, W = 2, 3, 17, 18
    P, E = 4, 96
    Wh, Ww = -(-H // P), -(-W // P)      # 5, 5

    key = jax.random.PRNGKey(0)
    k0, k1, k2, k3, k4 = jax.random.split(key, 5)
    x = jax.random.normal(k0, (N, C, H, W), jnp.float32)
    params = {
        "w": 0.1 * jax.random.normal(k1, (P, P, C, E), jnp.float32),   # HWIO
        "b": 0.1 * jax.random.normal(k2, (E,), jnp.float32),
        "gamma": 1.0 + 0.1 * jax.random.normal(k3, (E,), jnp.float32),
        "beta": 0.1 * jax.random.normal(k4, (E,), jnp.float32),
    }

    # 1) f32 matmul path with LayerNorm (norm_layer=nn.LayerNorm case).
    fwd = jax.jit(functools.partial(patch_embed_forward, patch_size=P, use_norm=True))
    out = jax.block_until_ready(fwd(x, params))
    assert out.shape == (N, E, Wh, Ww), out.shape
    ref = jax.block_until_ready(
        _ref_patch_embed(x, params, patch_size=P, use_norm=True))
    assert jnp.allclose(out, ref, atol=1e-4, rtol=1e-4), \
        float(jnp.max(jnp.abs(out - ref)))

    # 2) bf16 MXU operands (v6e/v7x fast path), f32 accumulation.
    fwd_bf16 = jax.jit(functools.partial(patch_embed_forward, patch_size=P,
                                         use_norm=True,
                                         compute_dtype=jnp.bfloat16))
    out_bf16 = jax.block_until_ready(fwd_bf16(x, params))
    assert jnp.allclose(out_bf16, ref, atol=1e-1, rtol=1e-1), \
        float(jnp.max(jnp.abs(out_bf16 - ref)))

    # 3) norm_layer=None case (conv projection only).
    fwd_nn = jax.jit(functools.partial(patch_embed_forward, patch_size=P, use_norm=False))
    out_nn = jax.block_until_ready(fwd_nn(x, params))
    ref_nn = jax.block_until_ready(
        _ref_patch_embed(x, params, patch_size=P, use_norm=False))
    assert jnp.allclose(out_nn, ref_nn, atol=1e-4, rtol=1e-4), \
        float(jnp.max(jnp.abs(out_nn - ref_nn)))

    print("KERNEL_OK")
</pallas_src>

<mosaic_0001>
module attributes {stable_mosaic.version = 11 : i64} {
  func.func @_patch_embed_ln_kernel(%arg0: i32, %arg1: memref<32x48xf32, #tpu.memory_space<vmem>>, %arg2: memref<48x96xf32, #tpu.memory_space<vmem>>, %arg3: memref<1x96xf32, #tpu.memory_space<vmem>>, %arg4: memref<1x96xf32, #tpu.memory_space<vmem>>, %arg5: memref<1x96xf32, #tpu.memory_space<vmem>>, %arg6: memref<32x96xf32, #tpu.memory_space<vmem>>) attributes {dimension_semantics = [#tpu.dimension_semantics<parallel>], iteration_bounds = array<i64: 2>, scalar_prefetch = 0 : i64, scratch_operands = 0 : i64, tpu.core_type = #tpu.core_type<tc>, window_params = [{transform_indices = @transform_0, window_bounds = array<i64: 32, 48>}, {pipeline_mode = #tpu.pipeline_mode<synchronous>, transform_indices = @transform_1, window_bounds = array<i64: 48, 96>}, {pipeline_mode = #tpu.pipeline_mode<synchronous>, transform_indices = @transform_2, window_bounds = array<i64: 1, 96>}, {pipeline_mode = #tpu.pipeline_mode<synchronous>, transform_indices = @transform_3, window_bounds = array<i64: 1, 96>}, {pipeline_mode = #tpu.pipeline_mode<synchronous>, transform_indices = @transform_4, window_bounds = array<i64: 1, 96>}, {transform_indices = @transform_5, window_bounds = array<i64: 32, 96>}]} {
    %c0 = arith.constant 0 : index
    %c0_0 = arith.constant 0 : index
    %0 = vector.load %arg1[%c0, %c0_0] : memref<32x48xf32, #tpu.memory_space<vmem>>, vector<32x48xf32>
    %c0_1 = arith.constant 0 : index
    %c0_2 = arith.constant 0 : index
    %1 = vector.load %arg2[%c0_1, %c0_2] : memref<48x96xf32, #tpu.memory_space<vmem>>, vector<48x96xf32>
    %cst = arith.constant dense<0.000000e+00> : vector<32x96xf32>
    %2 = tpu.matmul %0, %1, %cst {dimension_numbers = #tpu.dot_dimension_numbers<[1], [0], [0], [1], [0, 0, 1, 1], [], []>} : vector<32x48xf32>, vector<48x96xf32>, vector<32x96xf32> -> vector<32x96xf32>
    %c0_3 = arith.constant 0 : index
    %c0_4 = arith.constant 0 : index
    %3 = vector.load %arg3[%c0_3, %c0_4] : memref<1x96xf32, #tpu.memory_space<vmem>>, vector<1x96xf32>
    %4 = vector.broadcast %3 : vector<1x96xf32> to vector<32x96xf32>
    %5 = arith.addf %2, %4 : vector<32x96xf32>
    %cst_5 = arith.constant dense<0.000000e+00> : vector<32xf32>
    %6 = vector.multi_reduction <add>, %5, %cst_5 [1] : vector<32x96xf32> to vector<32xf32>
    %7 = vector.shape_cast %6 : vector<32xf32> to vector<32x1xf32>
    %cst_6 = arith.constant 9.600000e+01 : f32
    %8 = vector.broadcast %cst_6 : f32 to vector<32x1xf32>
    %9 = arith.divf %7, %8 : vector<32x1xf32>
    %10 = arith.mulf %5, %5 : vector<32x96xf32>
    %cst_7 = arith.constant dense<0.000000e+00> : vector<32xf32>
    %11 = vector.multi_reduction <add>, %10, %cst_7 [1] : vector<32x96xf32> to vector<32xf32>
    %12 = vector.shape_cast %11 : vector<32xf32> to vector<32x1xf32>
    %cst_8 = arith.constant 9.600000e+01 : f32
    %13 = vector.broadcast %cst_8 : f32 to vector<32x1xf32>
    %14 = arith.divf %12, %13 : vector<32x1xf32>
    %15 = arith.mulf %9, %9 : vector<32x1xf32>
    %16 = arith.subf %14, %15 : vector<32x1xf32>
    %cst_9 = arith.constant 0.000000e+00 : f32
    %17 = vector.broadcast %cst_9 : f32 to vector<32x1xf32>
    %18 = arith.maximumf %16, %17 : vector<32x1xf32>
    %19 = vector.broadcast %9 : vector<32x1xf32> to vector<32x96xf32>
    %20 = arith.subf %5, %19 : vector<32x96xf32>
    %cst_10 = arith.constant 9.99999974E-6 : f32
    %21 = vector.broadcast %cst_10 : f32 to vector<32x1xf32>
    %22 = arith.addf %18, %21 : vector<32x1xf32>
    %23 = math.rsqrt %22 : vector<32x1xf32>
    %24 = vector.broadcast %23 : vector<32x1xf32> to vector<32x96xf32>
    %25 = arith.mulf %20, %24 : vector<32x96xf32>
    %c0_11 = arith.constant 0 : index
    %c0_12 = arith.constant 0 : index
    %26 = vector.load %arg4[%c0_11, %c0_12] : memref<1x96xf32, #tpu.memory_space<vmem>>, vector<1x96xf32>
    %27 = vector.broadcast %26 : vector<1x96xf32> to vector<32x96xf32>
    %28 = arith.mulf %25, %27 : vector<32x96xf32>
    %c0_13 = arith.constant 0 : index
    %c0_14 = arith.constant 0 : index
    %29 = vector.load %arg5[%c0_13, %c0_14] : memref<1x96xf32, #tpu.memory_space<vmem>>, vector<1x96xf32>
    %30 = vector.broadcast %29 : vector<1x96xf32> to vector<32x96xf32>
    %31 = arith.addf %28, %30 : vector<32x96xf32>
    %c0_15 = arith.constant 0 : index
    %c0_16 = arith.constant 0 : index
    %32 = vector.load %arg6[%c0_15, %c0_16] : memref<32x96xf32, #tpu.memory_space<vmem>>, vector<32x96xf32>
    tpu.vector_store %arg6[%c0_15, %c0_16], %31 {strides = array<i32>} : memref<32x96xf32, #tpu.memory_space<vmem>>, vector<32x96xf32>,
    return
  }
  func.func @transform_0(%arg0: i32) -> (i32, i32) {
    %c0_i32 = arith.constant 0 : i32
    %c0_i32_0 = arith.constant 0 : i32
    return %arg0, %c0_i32 : i32, i32
  }
  func.func @transform_1(%arg0: i32) -> (i32, i32) {
    %c0_i32 = arith.constant 0 : i32
    %c0_i32_0 = arith.constant 0 : i32
    %c0_i32_1 = arith.constant 0 : i32
    return %c0_i32, %c0_i32_0 : i32, i32
  }
  func.func @transform_2(%arg0: i32) -> (i32, i32) {
    %c0_i32 = arith.constant 0 : i32
    %c0_i32_0 = arith.constant 0 : i32
    %c0_i32_1 = arith.constant 0 : i32
    return %c0_i32, %c0_i32_0 : i32, i32
  }
  func.func @transform_3(%arg0: i32) -> (i32, i32) {
    %c0_i32 = arith.constant 0 : i32
    %c0_i32_0 = arith.constant 0 : i32
    %c0_i32_1 = arith.constant 0 : i32
    return %c0_i32, %c0_i32_0 : i32, i32
  }
  func.func @transform_4(%arg0: i32) -> (i32, i32) {
    %c0_i32 = arith.constant 0 : i32
    %c0_i32_0 = arith.constant 0 : i32
    %c0_i32_1 = arith.constant 0 : i32
    return %c0_i32, %c0_i32_0 : i32, i32
  }
  func.func @transform_5(%arg0: i32) -> (i32, i32) {
    %c0_i32 = arith.constant 0 : i32
    %c0_i32_0 = arith.constant 0 : i32
    return %arg0, %c0_i32 : i32, i32
  }
}

</mosaic_0001>

<llo_original>
// kernel: patch_embed_forward.1
$region0: #{patch_embed_forward.1}
  #allocation0 [shape = 'u32[]', space=smem, size = 0x4, offset = 0x4, fixed_abs, tag = 'smem constant byte address 0x4 - core index']
  #allocation1 [shape = 'u32[144,128]{1,0:T(1,128)}', space=vmem, size = 0x12000, scoped, tag = 'internal scratch']
  %s0 = inlined_call_operand.vmem [shape: f32[64,48], index: 0, kind: input, shape index: {}]
  %s1 = inlined_call_operand.vmem [shape: f32[48,96], index: 1, kind: input, shape index: {}]
  %s2 = inlined_call_operand.vmem [shape: f32[1,96], index: 2, kind: input, shape index: {}]
  %s3 = inlined_call_operand.vmem [shape: f32[1,96], index: 3, kind: input, shape index: {}]
  %s4 = inlined_call_operand.vmem [shape: f32[1,96], index: 4, kind: input, shape index: {}]
  %s5 = inlined_call_operand.vmem [shape: f32[64,96], index: 5, kind: output, shape index: {}]
  %s6 = sld [smem:[#allocation0]]
  $region53: #{patch_embed_forward.1} parent=0
    _
  %s8 = ssub.s32 1, %s6
  %s9 = scalar_select 0, %s8, %s6
  loop: start=0, step=1, limit=4
  $region2: #{patch_embed_forward.1} parent=0 // loop_pre_header
    _
  $region3: #{patch_embed_forward.1} parent=0 // loop_header
    %s11 = sphi 0, %s15
    %p12 = scmp.ge.s32.totalorder %s11, 4
    %s21 = sphi 0, %s23
    %s24 = sphi 0, %s21
    %s25 = sphi 0, %s24
    %s41 = sphi 0, %s25
    %s45 = sphi 0, %s45
    %s47 = sphi 0, %s45
    %s48 = sphi 0, %s47
    %s62 = sphi 0, %s48
    %s66 = sphi 0, %s66
    %s68 = sphi 0, %s66
    %s69 = sphi 0, %s68
    %s83 = sphi 0, %s69
    %s87 = sphi 0, %s87
    %s89 = sphi 0, %s87
    %s90 = sphi 0, %s89
    %s104 = sphi 0, %s90
    %s108 = sphi 0, %s108
    %s110 = sphi 0, %s108
    %s111 = sphi 0, %s110
    %s125 = sphi 0, %s111
    %s131 = sphi 0, %s133
    %s134 = sphi 0, %s131
    %s135 = sphi 0, %s134
    %s151 = sphi 0, %s135
  $region4: #{patch_embed_forward.1} parent=0 // loop_header_branch
    %14 = sbr.rel (%p12) target = $region8
  $region5: #{patch_embed_forward.1} parent=0 // loop_body
    %s16 = ssub.s32 %s11, 1
    %s17 = ssub.s32 %s11, 2
    %s18 = sadd.s32 %s11, 1
    %s19 = ssub.s32 %s11, %s18
    %p20 = scmp.eq.s32.totalorder %s19, 0
    %s22 = sadd.s32 %s21, 1
    %s23 = scalar_select %p20, %s21, %s22
    %p26 = pneg %p20
    %p27 = scmp.eq.s32.totalorder %s11, 1
    %p28 = por %p26, %p27
    %p29 = scmp.ne.s32.totalorder %s21, %s24
    %p30 = scmp.eq.s32.totalorder %s11, 0
    %p31 = por %p29, %p30
    %p32 = scmp.ne.s32.totalorder %s21, %s24
    %p33 = scmp.eq.s32.totalorder %s16, 1
    %p34 = por %p32, %p33
    %p35 = scmp.ne.s32.totalorder %s24, %s25
    %p36 = scmp.eq.s32.totalorder %s16, 0
    %p37 = por %p35, %p36
    %p38 = scmp.ne.s32.totalorder %s24, %s25
    %p39 = scmp.eq.s32.totalorder %s17, 1
    %p40 = por %p38, %p39
    %p42 = scmp.ne.s32.totalorder %s25, %s41
    %p43 = scmp.eq.s32.totalorder %s17, 0
    %p44 = por %p42, %p43
    %s46 = sadd.s32 %s45, 1
    %p49 = scmp.eq.s32.totalorder %s11, 1
    %p50 = scmp.ne.s32.totalorder %s45, %s47
    %p51 = scmp.eq.s32.totalorder %s11, 0
    %p52 = por %p50, %p51
    %p53 = scmp.ne.s32.totalorder %s45, %s47
    %p54 = scmp.eq.s32.totalorder %s16, 1
    %p55 = por %p53, %p54
    %p56 = scmp.ne.s32.totalorder %s47, %s48
    %p57 = scmp.eq.s32.totalorder %s16, 0
    %p58 = por %p56, %p57
    %p59 = scmp.ne.s32.totalorder %s47, %s48
    %p60 = scmp.eq.s32.totalorder %s17, 1
    %p61 = por %p59, %p60
    %p63 = scmp.ne.s32.totalorder %s48, %s62
    %p64 = scmp.eq.s32.totalorder %s17, 0
    %p65 = por %p63, %p64
    %s67 = sadd.s32 %s66, 1
    %p70 = scmp.eq.s32.totalorder %s11, 1
    %p71 = scmp.ne.s32.totalorder %s66, %s68
    %p72 = scmp.eq.s32.totalorder %s11, 0
    %p73 = por %p71, %p72
    %p74 = scmp.ne.s32.totalorder %s66, %s68
    %p75 = scmp.eq.s32.totalorder %s16, 1
    %p76 = por %p74, %p75
    %p77 = scmp.ne.s32.totalorder %s68, %s69
    %p78 = scmp.eq.s32.totalorder %s16, 0
    %p79 = por %p77, %p78
    %p80 = scmp.ne.s32.totalorder %s68, %s69
    %p81 = scmp.eq.s32.totalorder %s17, 1
    %p82 = por %p80, %p81
    %p84 = scmp.ne.s32.totalorder %s69, %s83
    %p85 = scmp.eq.s32.totalorder %s17, 0
    %p86 = por %p84, %p85
    %s88 = sadd.s32 %s87, 1
    %p91 = scmp.eq.s32.totalorder %s11, 1
    %p92 = scmp.ne.s32.totalorder %s87, %s89
    %p93 = scmp.eq.s32.totalorder %s11, 0
    %p94 = por %p92, %p93
    %p95 = scmp.ne.s32.totalorder %s87, %s89
    %p96 = scmp.eq.s32.totalorder %s16, 1
    %p97 = por %p95, %p96
    %p98 = scmp.ne.s32.totalorder %s89, %s90
    %p99 = scmp.eq.s32.totalorder %s16, 0
    %p100 = por %p98, %p99
    %p101 = scmp.ne.s32.totalorder %s89, %s90
    %p102 = scmp.eq.s32.totalorder %s17, 1
    %p103 = por %p101, %p102
    %p105 = scmp.ne.s32.totalorder %s90, %s104
    %p106 = scmp.eq.s32.totalorder %s17, 0
    %p107 = por %p105, %p106
    %s109 = sadd.s32 %s108, 1
    %p112 = scmp.eq.s32.totalorder %s11, 1
    %p113 = scmp.ne.s32.totalorder %s108, %s110
    %p114 = scmp.eq.s32.totalorder %s11, 0
    %p115 = por %p113, %p114
    %p116 = scmp.ne.s32.totalorder %s108, %s110
    %p117 = scmp.eq.s32.totalorder %s16, 1
    %p118 = por %p116, %p117
    %p119 = scmp.ne.s32.totalorder %s110, %s111
    %p120 = scmp.eq.s32.totalorder %s16, 0
    %p121 = por %p119, %p120
    %p122 = scmp.ne.s32.totalorder %s110, %s111
    %p123 = scmp.eq.s32.totalorder %s17, 1
    %p124 = por %p122, %p123
    %p126 = scmp.ne.s32.totalorder %s111, %s125
    %p127 = scmp.eq.s32.totalorder %s17, 0
    %p128 = por %p126, %p127
    %s129 = ssub.s32 %s11, %s18
    %p130 = scmp.eq.s32.totalorder %s129, 0
    %s132 = sadd.s32 %s131, 1
    %s133 = scalar_select %p130, %s131, %s132
    %p136 = pneg %p130
    %p137 = scmp.eq.s32.totalorder %s11, 1
    %p138 = por %p136, %p137
    %p139 = scmp.ne.s32.totalorder %s131, %s134
    %p140 = scmp.eq.s32.totalorder %s11, 0
    %p141 = por %p139, %p140
    %p142 = scmp.ne.s32.totalorder %s131, %s134
    %p143 = scmp.eq.s32.totalorder %s16, 1
    %p144 = por %p142, %p143
    %p145 = scmp.ne.s32.totalorder %s134, %s135
    %p146 = scmp.eq.s32.totalorder %s16, 0
    %p147 = por %p145, %p146
    %p148 = scmp.ne.s32.totalorder %s134, %s135
    %p149 = scmp.eq.s32.totalorder %s17, 1
    %p150 = por %p148, %p149
    %p152 = scmp.ne.s32.totalorder %s135, %s151
    %p153 = scmp.eq.s32.totalorder %s17, 0
    %p154 = por %p152, %p153
    %p155 = scmp.le.s32.totalorder 1, %s11
    %p156 = scmp.lt.s32.totalorder %s11, 3
    %p157 = pnand %p155, %p156
    %p158 = pneg %p157
    // Predicated region
    $region9: #{patch_embed_forward.1} parent=5 // pred_check
      _
    $region10: #{patch_embed_forward.1} parent=5 // pred_check_branch
      %160 = sbr.rel (%p157) target = $region12
    $region11: #{patch_embed_forward.1} parent=5 // pred_region
      %s161 = ssub.s32 %s11, 1
      // Predicated region
      $region13: #{patch_embed_forward.1} parent=11 // pred_check
        %p162 = pneg %p58
      $region14: #{patch_embed_forward.1} parent=11 // pred_check_branch
        %164 = sbr.rel (%p162) target = $region16
      $region15: #{patch_embed_forward.1} parent=11 // pred_region
        _
      $region16: #{patch_embed_forward.1} parent=11 // pred_fallthru
        _
      // Predicated region
      $region17: #{patch_embed_forward.1} parent=11 // pred_check
        %p165 = pneg %p79
      $region18: #{patch_embed_forward.1} parent=11 // pred_check_branch
        %167 = sbr.rel (%p165) target = $region20
      $region19: #{patch_embed_forward.1} parent=11 // pred_region
        _
      $region20: #{patch_embed_forward.1} parent=11 // pred_fallthru
        _
      // Predicated region
      $region21: #{patch_embed_forward.1} parent=11 // pred_check
        %p168 = pneg %p100
      $region22: #{patch_embed_forward.1} parent=11 // pred_check_branch
        %170 = sbr.rel (%p168) target = $region24
      $region23: #{patch_embed_forward.1} parent=11 // pred_region
        _
      $region24: #{patch_embed_forward.1} parent=11 // pred_fallthru
        _
      // Predicated region
      $region25: #{patch_embed_forward.1} parent=11 // pred_check
        %p171 = pneg %p121
      $region26: #{patch_embed_forward.1} parent=11 // pred_check_branch
        %173 = sbr.rel (%p171) target = $region28
      $region27: #{patch_embed_forward.1} parent=11 // pred_region
        _
      $region28: #{patch_embed_forward.1} parent=11 // pred_fallthru
        _
    $region12: #{patch_embed_forward.1} parent=5 // pred_fallthru
      _
    %p174 = scmp.lt.s32.totalorder %s11, 2
    // Predicated region
    $region29: #{patch_embed_forward.1} parent=5 // pred_check
      %p175 = pneg %p174
    $region30: #{patch_embed_forward.1} parent=5 // pred_check_branch
      %177 = sbr.rel (%p175) target = $region32
    $region31: #{patch_embed_forward.1} parent=5 // pred_region
      // Predicated region
      $region33: #{patch_embed_forward.1} parent=31 // pred_check
        %p178 = pneg %p31
      $region34: #{patch_embed_forward.1} parent=31 // pred_check_branch
        %180 = sbr.rel (%p178) target = $region36
      $region35: #{patch_embed_forward.1} parent=31 // pred_region
        %s181 = smul.u32 4, %s11
        %p182 = scmp.lt.s32.totalorder %s181, 7
        %s183 = scalar_select %p182, %s181, 7
        %s184 = smul.addr %s183, 8
        %s185 = scalar_lea.vmem %s0, %s184
        %s186 = smul.u32 4, %s11
      $region36: #{patch_embed_forward.1} parent=31 // pred_fallthru
        _
    $region32: #{patch_embed_forward.1} parent=5 // pred_fallthru
      _
    %p187 = scmp.le.s32.totalorder 1, %s11
    %p188 = scmp.lt.s32.totalorder %s11, 3
    %p189 = pnand %p187, %p188
    %p190 = pneg %p189
    // Predicated region
    $region37: #{patch_embed_forward.1} parent=5 // pred_check
      _
    $region38: #{patch_embed_forward.1} parent=5 // pred_check_branch
      %192 = sbr.rel (%p189) target = $region40
    $region39: #{patch_embed_forward.1} parent=5 // pred_region
      %s193 = ssub.s32 %s11, 1
      %s194 = smul.u32 4, %s16
      %p195 = scmp.lt.s32.totalorder %s194, 7
      %s196 = scalar_select %p195, %s194, 7
      %s197 = smul.addr %s196, 8
      %s198 = scalar_lea.vmem %s0, %s197
      %p199 = pneg %p37
      %p200 = pneg %p34
      %p201 = pneg %p58
      %p202 = pneg %p55
      %p203 = pneg %p79
      %p204 = pneg %p76
      %p205 = pneg %p100
      %p206 = pneg %p97
      %p207 = pneg %p121
      %p208 = pneg %p118
      %p209 = pneg %p147
      %p210 = pneg %p144
      %s211 = smul.u32 4, %s16
      %p212 = scmp.lt.s32.totalorder %s211, 7
      %s213 = scalar_select %p212, %s211, 7
      %s214 = smul.addr %s213, 8
      %s215 = scalar_lea.vmem %s5, %s214
      %s216 = smul.u32 4, %s16
      %p217 = scmp.lt.s32.totalorder %s216, 7
      %s218 = scalar_select %p217, %s216, 7
      %s219 = smul.addr %s218, 8
      %s220 = scalar_lea.vmem %s0, %s219
      %s221 = smul.u32 4, %s16
      %s222 = smul.u32 4, %s16
      %p223 = scmp.lt.s32.totalorder %s222, 7
      %s224 = scalar_select %p223, %s222, 7
      %s225 = smul.addr %s224, 8
      %s226 = scalar_lea.vmem %s5, %s225
      %s227 = smul.u32 4, %s16
      %v228 = vld [vmem:[%s220] sm:$0xff]
      %v229 = vld [vmem:[%s220 + $0x8] sm:$0xff]
      %v230 = vld [vmem:[%s220 + $0x10] sm:$0xff]
      %v231 = vld [vmem:[%s220 + $0x18] sm:$0xff]
      %v232 = vld [vmem:[%s1] sm:$0xff]
      %v233 = vld [vmem:[%s1 + $0x8] sm:$0xff]
      %v234 = vld [vmem:[%s1 + $0x10] sm:$0xff]
      %v235 = vld [vmem:[%s1 + $0x18] sm:$0xff]
      %v236 = vld [vmem:[%s1 + $0x20] sm:$0xff]
      %v237 = vld [vmem:[%s1 + $0x28] sm:$0xff]
      %v238 = vld [vmem:[%s2] sm:$0x1]
      %v240 = vlaneseq
      %v241 = vshrl.u32 %v240, 7
      %v242 = vsub.s32 0, %v241
      %v243 = vrot.slane %v238, %v242
      %vm245 = vcmask 392192
      %v247 = vsel %vm245, %v228, 0
      %v250 = vsel %vm245, %v229, 0
      %v253 = vsel %vm245, %v230, 0
      %v256 = vsel %vm245, %v231, 0
      %258 = vmatprep.subr.mxu0 0.0
      %259 = vmatpush1.msra.mxu0 %v232
      %260 = vmatprep.subr.mxu0 0.0
      %261 = vmatpush1.msra.mxu0 %v233
      %262 = vmatprep.subr.mxu0 0.0
      %263 = vmatpush1.msra.mxu0 %v234
      %264 = vmatprep.subr.mxu0 0.0
      %265 = vmatpush1.msra.mxu0 %v235
      %266 = vmatprep.subr.mxu0 0.0
      %267 = vmatpush1.msra.mxu0 %v236
      %268 = vmatprep.subr.mxu0 0.0
      %269 = vmatpush1.msra.mxu0 %v237
      %270 = vmatprep.subr.mxu0 0.0
      %271 = vmatpush1.msra.mxu0 0.0
      %272 = vmatprep.subr.mxu0 0.0
      %273 = vmatpush1.msra.mxu0 0.0
      %274 = vmatprep.subr.mxu0 0.0
      %275 = vmatpush1.msra.mxu0 0.0
      %276 = vmatprep.subr.mxu0 0.0
      %277 = vmatpush1.msra.mxu0 0.0
      %278 = vmatprep.subr.mxu0 0.0
      %279 = vmatpush1.msra.mxu0 0.0
      %280 = vmatprep.subr.mxu0 0.0
      %281 = vmatpush1.msra.mxu0 0.0
      %282 = vmatprep.subr.mxu0 0.0
      %283 = vmatpush1.msra.mxu0 0.0
      %284 = vmatprep.subr.mxu0 0.0
      %285 = vmatpush1.msra.mxu0 0.0
      %286 = vmatprep.subr.mxu0 0.0
      %287 = vmatpush1.msra.mxu0 0.0
      %288 = vmatprep.subr.mxu0 0.0
      %289 = vmatpush1.msra.mxu0 0.0
      %290 = vmatprep.subr.mxu0 0.0
      %291 = vmatpush1.msra.mxu0 0.0
      %292 = vmatprep.subr.mxu0 0.0
      %293 = vmatpush1.msra.mxu0 0.0
      %294 = vmatprep.subr.mxu0 0.0
      %295 = vmatpush1.msra.mxu0 0.0
      %296 = vmatprep.subr.mxu0 0.0
      %297 = vmatpush1.msra.mxu0 0.0
      %298 = vmatprep.subr.mxu0 0.0
      %299 = vmatpush1.msra.mxu0 0.0
      %300 = vmatprep.subr.mxu0 0.0
      %301 = vmatpush1.msra.mxu0 0.0
      %302 = vmatprep.subr.mxu0 0.0
      %303 = vmatpush1.msra.mxu0 0.0
      %304 = vmatprep.subr.mxu0 0.0
      %305 = vmatpush1.msra.mxu0 0.0
      %306 = vmatprep.subr.mxu0 0.0
      %307 = vmatpush1.msra.mxu0 0.0
      %308 = vmatprep.subr.mxu0 0.0
      %309 = vmatpush1.msra.mxu0 0.0
      %310 = vmatprep.subr.mxu0 0.0
      %311 = vmatpush1.msra.mxu0 0.0
      %312 = vmatprep.subr.mxu0 0.0
      %313 = vmatpush1.msra.mxu0 0.0
      %314 = vmatprep.subr.mxu0 0.0
      %315 = vmatpush1.msra.mxu0 0.0
      %316 = vmatprep.subr.mxu0 0.0
      %317 = vmatpush1.msra.mxu0 0.0
      %318 = vmatprep.subr.mxu0 0.0
      %319 = vmatpush1.msra.mxu0 0.0
      %320 = vmatprep.subr.mxu0 0.0
      %321 = vmatpush1.msra.mxu0 0.0
      %322 = vmatprep.mubr.f32.mxu0 0.0
      %323 = vmatmul.mubr.f32.gmra.mrb[0].mxu0 %v247
      %v324 = vpop.f32.mrb[0].mxu0
      %v325 = vadd.f32 %v243, %v324
      %v326 = vpop.f32.mrb[0].mxu0
      %327 = vmatprep.mubr.f32.mxu0 0.0
      %328 = vmatmul.mubr.f32.gmra.mrb[0].mxu0 %v250
      %v329 = vpop.f32.mrb[0].mxu0
      %v330 = vadd.f32 %v243, %v329
      %v331 = vpop.f32.mrb[0].mxu0
      %332 = vmatprep.mubr.f32.mxu0 0.0
      %333 = vmatmul.mubr.f32.gmra.mrb[0].mxu0 %v253
      %v334 = vpop.f32.mrb[0].mxu0
      %v335 = vadd.f32 %v243, %v334
      %v336 = vpop.f32.mrb[0].mxu0
      %337 = vmatprep.mubr.f32.mxu0 0.0
      %338 = vmatmul.mubr.f32.gmra.mrb[0].mxu0 %v256
      %v339 = vpop.f32.mrb[0].mxu0
      %v340 = vadd.f32 %v243, %v339
      %v341 = vpop.f32.mrb[0].mxu0
      %342 = vdwg.mxu0
      %vm343 = vcmask 785408
      %v344 = vsel %vm343, %v325, 0.0
      %345 = vadd.xlane.f32.xlu0 %v344
      %v346 = vpop.xlane.xlu0 %345
      %v347 = vsel %vm343, %v330, 0.0
      %348 = vadd.xlane.f32.xlu0 %v347
      %v349 = vpop.xlane.xlu0 %348
      %v350 = vsel %vm343, %v335, 0.0
      %351 = vadd.xlane.f32.xlu0 %v350
      %v352 = vpop.xlane.xlu0 %351
      %v353 = vsel %vm343, %v340, 0.0
      %354 = vadd.xlane.f32.xlu0 %v353
      %v355 = vpop.xlane.xlu0 %354
      %v356 = vrcp.pop 96.0
      %v357 = vmul.f32 %v346, %v356
      %v358 = vmul.f32 %v349, %v356
      %v359 = vmul.f32 %v352, %v356
      %v360 = vmul.f32 %v355, %v356
      %v361 = vmul.f32 %v325, %v325
      %v362 = vmul.f32 %v330, %v330
      %v363 = vmul.f32 %v335, %v335
      %v364 = vmul.f32 %v340, %v340
      %v365 = vsel %vm343, %v361, 0.0
      %366 = vadd.xlane.f32.xlu0 %v365
      %v367 = vpop.xlane.xlu0 %366
      %v368 = vsel %vm343, %v362, 0.0
      %369 = vadd.xlane.f32.xlu0 %v368
      %v370 = vpop.xlane.xlu0 %369
      %v371 = vsel %vm343, %v363, 0.0
      %372 = vadd.xlane.f32.xlu0 %v371
      %v373 = vpop.xlane.xlu0 %372
      %v374 = vsel %vm343, %v364, 0.0
      %375 = vadd.xlane.f32.xlu0 %v374
      %v376 = vpop.xlane.xlu0 %375
      %v377 = vmul.f32 %v367, %v356
      %v378 = vmul.f32 %v370, %v356
      %v379 = vmul.f32 %v373, %v356
      %v380 = vmul.f32 %v376, %v356
      %v381 = vmul.f32 %v357, %v357
      %v382 = vmul.f32 %v358, %v358
      %v383 = vmul.f32 %v359, %v359
      %v384 = vmul.f32 %v360, %v360
      %v385 = vsub.f32 %v377, %v381
      %v386 = vsub.f32 %v378, %v382
      %v387 = vsub.f32 %v379, %v383
      %v388 = vsub.f32 %v380, %v384
      %v389 = vmax.f32 %v385, 0.0
      %v390 = vmax.f32 %v386, 0.0
      %v391 = vmax.f32 %v387, 0.0
      %v392 = vmax.f32 %v388, 0.0
      %v393 = vsub.f32 %v325, %v357
      %v394 = vsub.f32 %v330, %v358
      %v395 = vsub.f32 %v335, %v359
      %v396 = vsub.f32 %v340, %v360
      %v397 = vadd.f32 %v389, 1e-05
      %v398 = vadd.f32 %v390, 1e-05
      %v399 = vadd.f32 %v391, 1e-05
      %v400 = vadd.f32 %v392, 1e-05
      %v401 = vrsqrt.pop %v397
      %v402 = vrsqrt.pop %v398
      %v403 = vrsqrt.pop %v399
      %v404 = vrsqrt.pop %v400
      %v405 = vmul.f32 %v393, %v401
      %v406 = vmul.f32 %v394, %v402
      %v407 = vmul.f32 %v395, %v403
      %v408 = vmul.f32 %v396, %v404
      %v409 = vld [vmem:[%s3] sm:$0x1]
      %v411 = vlaneseq
      %v412 = vshrl.u32 %v411, 7
      %v413 = vsub.s32 0, %v412
      %v414 = vrot.slane %v409, %v413
      %v416 = vmul.f32 %v405, %v414
      %v417 = vmul.f32 %v406, %v414
      %v418 = vmul.f32 %v407, %v414
      %v419 = vmul.f32 %v408, %v414
      %v420 = vld [vmem:[%s4] sm:$0x1]
      %v422 = vlaneseq
      %v423 = vshrl.u32 %v422, 7
      %v424 = vsub.s32 0, %v423
      %v425 = vrot.slane %v420, %v424
      %v427 = vadd.f32 %v416, %v425
      %v428 = vadd.f32 %v417, %v425
      %v429 = vadd.f32 %v418, %v425
      %v430 = vadd.f32 %v419, %v425
      %431 = vst.msk [vmem:[%s226] sm:$0xff] %vm343, %v427
      %432 = vst.msk [vmem:[%s226 + $0x8] sm:$0xff] %vm343, %v428
      %433 = vst.msk [vmem:[%s226 + $0x10] sm:$0xff] %vm343, %v429
      %434 = vst.msk [vmem:[%s226 + $0x18] sm:$0xff] %vm343, %v430
      %s435 = smul.u32 4, %s16
      %p436 = scmp.lt.s32.totalorder %s435, 7
      %s437 = scalar_select %p436, %s435, 7
      %s438 = smul.addr %s437, 8
      %s439 = scalar_lea.vmem %s5, %s438
      // Predicated region
      $region41: #{patch_embed_forward.1} parent=39 // pred_check
        %p440 = pneg %p144
      $region42: #{patch_embed_forward.1} parent=39 // pred_check_branch
        %442 = sbr.rel (%p440) target = $region44
      $region43: #{patch_embed_forward.1} parent=39 // pred_region
        %s443 = smul.u32 4, %s16
      $region44: #{patch_embed_forward.1} parent=39 // pred_fallthru
        _
    $region40: #{patch_embed_forward.1} parent=5 // pred_fallthru
      _
    %p444 = scmp.le.s32.totalorder 2, %s11
    // Predicated region
    $region45: #{patch_embed_forward.1} parent=5 // pred_check
      %p445 = pneg %p444
    $region46: #{patch_embed_forward.1} parent=5 // pred_check_branch
      %447 = sbr.rel (%p445) target = $region48
    $region47: #{patch_embed_forward.1} parent=5 // pred_region
      %s448 = ssub.s32 %s11, 2
      // Predicated region
      $region49: #{patch_embed_forward.1} parent=47 // pred_check
        %p449 = pneg %p150
      $region50: #{patch_embed_forward.1} parent=47 // pred_check_branch
        %451 = sbr.rel (%p449) target = $region52
      $region51: #{patch_embed_forward.1} parent=47 // pred_region
        %s452 = smul.u32 4, %s17
        %p453 = scmp.lt.s32.totalorder %s452, 7
        %s454 = scalar_select %p453, %s452, 7
        %s455 = smul.addr %s454, 8
        %s456 = scalar_lea.vmem %s5, %s455
      $region52: #{patch_embed_forward.1} parent=47 // pred_fallthru
        _
    $region48: #{patch_embed_forward.1} parent=5 // pred_fallthru
      _
  $region6: #{patch_embed_forward.1} parent=0 // loop_footer
    %s15 = sadd.s32 1, %s11
  $region7: #{patch_embed_forward.1} parent=0 // loop_footer_branch
    %10 = sbr.rel target = $region3
  $region8: #{patch_embed_forward.1} parent=0 // loop_exit
    _

</llo_original>
